<compile_context>
chip_gen: v6e
topology: v6e:2x2x1
jax: 0.10.0
libtpu: 0.0.40
codegen_flags: <defaults>
</compile_context>

<pallas_src>
import functools

import jax
import jax.numpy as jnp
import numpy as np
from jax.experimental import pallas as pl
from jax.experimental.pallas import tpu as pltpu


def _graph_attn_bias_kernel(mhd, ab_ref, sp_ref, ei_ref, tab_ref, out_ref):
    """Per (graph, row-tile) kernel.  rows = tn * N (flattened (i, j)).

    ab_ref : (1, 1, rows)   f32   attn_bias
    sp_ref : (1, 1, rows)   i32   spatial_pos
    ei_ref : (1, DF, rows)  i32   edge indices, already offset by d*V
    tab_ref: (H, DV)        f32   folded table ((etab @ W[d]) / F), transposed
    out_ref: (1, H, rows)   f32   heads-major output
    """
    DF = ei_ref.shape[1]
    rows = ei_ref.shape[2]
    H, DV = tab_ref.shape

    idx = ei_ref[0]                                           # (DF, rows) i32
    iota_c = jax.lax.broadcasted_iota(jnp.int32, (DV, rows), 0)

    # Transposed one-hot count: oh[c, r] = #{(d, f) : d*V + idx[r, d, f] == c}.
    # TODO(synk): out-of-range / negative padding indices map to a zero
    # contribution here instead of indexing a real embedding row; valid
    # indices (0..V-1, incl. row 0, which init_params overwrites) match the
    # reference exactly.
    oh = jnp.zeros((DV, rows), jnp.float32)
    for k in range(DF):                                       # DF small & static
        oh = oh + (idx[k:k + 1, :] == iota_c).astype(jnp.float32)

    # Single MXU matmul with K = D*V:  (H, DV) @ (DV, rows) -> (H, rows).
    acc = jnp.dot(tab_ref[...], oh, preferred_element_type=jnp.float32)

    # spatial_pos_ processing; one exact reciprocal instead of H divides.
    sp = sp_ref[0]                                            # (1, rows) i32
    sp = jnp.where(sp == 0, 1, sp)
    sp = jnp.where(sp > 1, sp - 1, sp)
    sp = jnp.clip(sp, 0, mhd)
    inv = pl.reciprocal(sp.astype(jnp.float32))               # approx=False

    # Fused scale + bias add, broadcast (1, rows) over the H sublanes.
    out_ref[0] = acc * inv + ab_ref[0]


def _pick_row_tile(n_node, max_rows=4096):
    """Largest row tile tn (divisor of N) with tn*N <= max_rows, preferring
    lane-dense (multiple-of-128) block widths."""
    if n_node * n_node <= max_rows:
        return n_node
    cap = max(1, max_rows // n_node)
    for tn in range(cap, 0, -1):
        if n_node % tn == 0 and (tn * n_node) % 128 == 0:
            return tn
    for tn in range(cap, 0, -1):
        if n_node % tn == 0:
            return tn
    return n_node


def graph_attn_bias(attn_bias, spatial_pos, edge_input, edge_enc_w, edge_dis_w,
                    *, num_heads, multi_hop_max_dist):
    B, N, _ = attn_bias.shape
    H = num_heads
    V = edge_enc_w.shape[0]

    # --- plain-JAX glue: slice, fold weights, re-layout (single cheap pass) ---
    ei = edge_input[:, :, :, :multi_hop_max_dist, :]          # (B, N, N, D, F)
    D = ei.shape[3]
    F = ei.shape[4]
    W = edge_dis_w.reshape(-1, H, H)[:D]                      # (D, H, H)

    # Folded table: T[d*V + v, h'] = sum_h etab[v, h] * W[d, h, h'] / F.
    table = jnp.einsum('vh,dhk->dvk',
                       edge_enc_w.astype(jnp.float32),
                       W.astype(jnp.float32)).reshape(D * V, H) * (1.0 / F)
    table_t = jnp.asarray(table.T)                            # (H, D*V)
    DV = D * V
    DF = D * F

    # Shift indices by d*V and re-layout to (B, D*F, N*N): lane-dense blocks.
    offs = (jnp.arange(D, dtype=jnp.int32) * V)[None, None, None, :, None]
    ei_prep = jnp.transpose(ei.astype(jnp.int32) + offs,
                            (0, 3, 4, 1, 2)).reshape(B, DF, N * N)

    ab = attn_bias.astype(jnp.float32).reshape(B, 1, N * N)
    sp = spatial_pos.astype(jnp.int32).reshape(B, 1, N * N)

    tn = _pick_row_tile(N)
    rows = tn * N
    grid = (B, N // tn)

    kernel = functools.partial(_graph_attn_bias_kernel, multi_hop_max_dist)

    out = pl.pallas_call(
        kernel,
        out_shape=jax.ShapeDtypeStruct((B, H, N * N), jnp.float32),
        grid=grid,
        in_specs=[
            pl.BlockSpec((1, 1, rows), lambda b, r: (b, 0, r)),     # attn_bias
            pl.BlockSpec((1, 1, rows), lambda b, r: (b, 0, r)),     # spatial_pos
            pl.BlockSpec((1, DF, rows), lambda b, r: (b, 0, r)),    # edge idx
            pl.BlockSpec((H, DV), lambda b, r: (0, 0)),             # folded table
        ],
        out_specs=pl.BlockSpec((1, H, rows), lambda b, r: (b, 0, r)),
        compiler_params=pltpu.CompilerParams(
            dimension_semantics=("parallel", "parallel")),
    )(ab, sp, ei_prep, table_t)

    # Free (contiguous) reshape to the PyTorch output layout [B, H, N, N].
    return out.reshape(B, H, N, N)


def reference(attn_bias, spatial_pos, edge_input, edge_enc_w, edge_dis_w,
              *, num_heads, multi_hop_max_dist):
    """Pure-JAX mirror of the PyTorch forward (multi_hop path) for validation."""
    B, N, _ = attn_bias.shape
    H = num_heads
    gab = jnp.broadcast_to(attn_bias[:, None], (B, H, N, N))

    sp = spatial_pos
    sp = jnp.where(sp == 0, 1, sp)
    sp = jnp.where(sp > 1, sp - 1, sp)
    sp = jnp.clip(sp, 0, multi_hop_max_dist)

    ei = edge_input[:, :, :, :multi_hop_max_dist, :]
    emb = edge_enc_w[ei]                        # [B,N,N,D,F,H]
    emb = emb.mean(-2)                          # [B,N,N,D,H]
    D = emb.shape[-2]
    flat = emb.transpose(3, 0, 1, 2, 4).reshape(D, -1, H)
    W = edge_dis_w.reshape(-1, H, H)[:D]
    flat = jnp.einsum('dmh,dhk->dmk', flat, W)
    emb = flat.reshape(D, B, N, N, H).transpose(1, 2, 3, 0, 4)
    emb = emb.sum(-2) / sp.astype(jnp.float32)[..., None]
    return gab + emb.transpose(0, 3, 1, 2)


if __name__ == "__main__":
    # --- module hyperparameters (edge_type='multi_hop') ---
    num_heads = 8
    num_edges = 31            # vocab = num_edges + 1 = 32
    num_edge_dis = 8
    multi_hop_max_dist = 4
    n_layers = 2              # only affects nn.Linear init -> unused here

    # --- data shapes ---
    B, N = 2, 8               # n_graph, n_node
    max_dist_data = 6         # edge_input's stored max distance
    F = 2                     # number of edge features

    key = jax.random.PRNGKey(0)
    k1, k2, k3, k4, k5, k6 = jax.random.split(key, 6)

    # deterministic parameter init (mimics init_params: normal(0, 0.02))
    V = num_edges + 1
    edge_enc_w = 0.02 * jax.random.normal(k1, (V, num_heads), dtype=jnp.float32)
    edge_dis_w = 0.02 * jax.random.normal(
        k2, (num_edge_dis * num_heads * num_heads, 1), dtype=jnp.float32)
    # nn.Embedding(padding_idx=0) zero row is overwritten by init_params'
    # normal_() in the reference module, so no special handling of row 0 is needed.

    # deterministic inputs
    attn_bias = jax.random.normal(k3, (B, N, N), dtype=jnp.float32)
    spatial_pos = jax.random.randint(k4, (B, N, N), 0, 10, dtype=jnp.int32)
    edge_input = jax.random.randint(
        k5, (B, N, N, max_dist_data, F), 0, num_edges + 1, dtype=jnp.int32)

    out = graph_attn_bias(attn_bias, spatial_pos, edge_input, edge_enc_w, edge_dis_w,
                          num_heads=num_heads, multi_hop_max_dist=multi_hop_max_dist)
    out = jax.block_until_ready(out)

    ref = reference(attn_bias, spatial_pos, edge_input, edge_enc_w, edge_dis_w,
                    num_heads=num_heads, multi_hop_max_dist=multi_hop_max_dist)
    ref = jax.block_until_ready(ref)

    assert out.shape == (B, num_heads, N, N)
    np.testing.assert_allclose(np.asarray(out), np.asarray(ref), rtol=1e-5, atol=1e-5)
    print("KERNEL_OK")
</pallas_src>

<mosaic_0001>
module attributes {stable_mosaic.version = 11 : i64} {
  func.func @_graph_attn_bias_kernel(%arg0: i32, %arg1: i32, %arg2: memref<1x1x64xf32, #tpu.memory_space<vmem>>, %arg3: memref<1x1x64xi32, #tpu.memory_space<vmem>>, %arg4: memref<1x8x64xi32, #tpu.memory_space<vmem>>, %arg5: memref<8x128xf32, #tpu.memory_space<vmem>>, %arg6: memref<1x8x64xf32, #tpu.memory_space<vmem>>) attributes {dimension_semantics = [#tpu.dimension_semantics<parallel>, #tpu.dimension_semantics<parallel>], iteration_bounds = array<i64: 2, 1>, scalar_prefetch = 0 : i64, scratch_operands = 0 : i64, tpu.core_type = #tpu.core_type<tc>, window_params = [{transform_indices = @transform_0, window_bounds = array<i64: 1, 1, 64>}, {transform_indices = @transform_1, window_bounds = array<i64: 1, 1, 64>}, {transform_indices = @transform_2, window_bounds = array<i64: 1, 8, 64>}, {pipeline_mode = #tpu.pipeline_mode<synchronous>, transform_indices = @transform_3, window_bounds = array<i64: 8, 128>}, {transform_indices = @transform_4, window_bounds = array<i64: 1, 8, 64>}]} {
    %c0 = arith.constant 0 : index
    %c0_0 = arith.constant 0 : index
    %c0_1 = arith.constant 0 : index
    %0 = vector.load %arg4[%c0, %c0_0, %c0_1] : memref<1x8x64xi32, #tpu.memory_space<vmem>>, vector<1x8x64xi32>
    %1 = vector.shape_cast %0 : vector<1x8x64xi32> to vector<8x64xi32>
    %2 = tpu.iota {dimensions = array<i32: 0>} : vector<128x64xi32>
    %cst = arith.constant 0.000000e+00 : f32
    %3 = vector.broadcast %cst : f32 to vector<128x64xf32>
    %4 = vector.extract_strided_slice %1 {offsets = [0, 0], sizes = [1, 64], strides = [1, 1]} : vector<8x64xi32> to vector<1x64xi32>
    %5 = vector.broadcast %4 : vector<1x64xi32> to vector<128x64xi32>
    %6 = arith.cmpi eq, %5, %2 : vector<128x64xi32>
    %7 = arith.extui %6 : vector<128x64xi1> to vector<128x64xi32>
    %8 = arith.sitofp %7 : vector<128x64xi32> to vector<128x64xf32>
    %9 = arith.addf %3, %8 : vector<128x64xf32>
    %10 = vector.extract_strided_slice %1 {offsets = [1, 0], sizes = [1, 64], strides = [1, 1]} : vector<8x64xi32> to vector<1x64xi32>
    %11 = vector.broadcast %10 : vector<1x64xi32> to vector<128x64xi32>
    %12 = arith.cmpi eq, %11, %2 : vector<128x64xi32>
    %13 = arith.extui %12 : vector<128x64xi1> to vector<128x64xi32>
    %14 = arith.sitofp %13 : vector<128x64xi32> to vector<128x64xf32>
    %15 = arith.addf %9, %14 : vector<128x64xf32>
    %16 = vector.extract_strided_slice %1 {offsets = [2, 0], sizes = [1, 64], strides = [1, 1]} : vector<8x64xi32> to vector<1x64xi32>
    %17 = vector.broadcast %16 : vector<1x64xi32> to vector<128x64xi32>
    %18 = arith.cmpi eq, %17, %2 : vector<128x64xi32>
    %19 = arith.extui %18 : vector<128x64xi1> to vector<128x64xi32>
    %20 = arith.sitofp %19 : vector<128x64xi32> to vector<128x64xf32>
    %21 = arith.addf %15, %20 : vector<128x64xf32>
    %22 = vector.extract_strided_slice %1 {offsets = [3, 0], sizes = [1, 64], strides = [1, 1]} : vector<8x64xi32> to vector<1x64xi32>
    %23 = vector.broadcast %22 : vector<1x64xi32> to vector<128x64xi32>
    %24 = arith.cmpi eq, %23, %2 : vector<128x64xi32>
    %25 = arith.extui %24 : vector<128x64xi1> to vector<128x64xi32>
    %26 = arith.sitofp %25 : vector<128x64xi32> to vector<128x64xf32>
    %27 = arith.addf %21, %26 : vector<128x64xf32>
    %28 = vector.extract_strided_slice %1 {offsets = [4, 0], sizes = [1, 64], strides = [1, 1]} : vector<8x64xi32> to vector<1x64xi32>
    %29 = vector.broadcast %28 : vector<1x64xi32> to vector<128x64xi32>
    %30 = arith.cmpi eq, %29, %2 : vector<128x64xi32>
    %31 = arith.extui %30 : vector<128x64xi1> to vector<128x64xi32>
    %32 = arith.sitofp %31 : vector<128x64xi32> to vector<128x64xf32>
    %33 = arith.addf %27, %32 : vector<128x64xf32>
    %34 = vector.extract_strided_slice %1 {offsets = [5, 0], sizes = [1, 64], strides = [1, 1]} : vector<8x64xi32> to vector<1x64xi32>
    %35 = vector.broadcast %34 : vector<1x64xi32> to vector<128x64xi32>
    %36 = arith.cmpi eq, %35, %2 : vector<128x64xi32>
    %37 = arith.extui %36 : vector<128x64xi1> to vector<128x64xi32>
    %38 = arith.sitofp %37 : vector<128x64xi32> to vector<128x64xf32>
    %39 = arith.addf %33, %38 : vector<128x64xf32>
    %40 = vector.extract_strided_slice %1 {offsets = [6, 0], sizes = [1, 64], strides = [1, 1]} : vector<8x64xi32> to vector<1x64xi32>
    %41 = vector.broadcast %40 : vector<1x64xi32> to vector<128x64xi32>
    %42 = arith.cmpi eq, %41, %2 : vector<128x64xi32>
    %43 = arith.extui %42 : vector<128x64xi1> to vector<128x64xi32>
    %44 = arith.sitofp %43 : vector<128x64xi32> to vector<128x64xf32>
    %45 = arith.addf %39, %44 : vector<128x64xf32>
    %46 = vector.extract_strided_slice %1 {offsets = [7, 0], sizes = [1, 64], strides = [1, 1]} : vector<8x64xi32> to vector<1x64xi32>
    %47 = vector.broadcast %46 : vector<1x64xi32> to vector<128x64xi32>
    %48 = arith.cmpi eq, %47, %2 : vector<128x64xi32>
    %49 = arith.extui %48 : vector<128x64xi1> to vector<128x64xi32>
    %50 = arith.sitofp %49 : vector<128x64xi32> to vector<128x64xf32>
    %51 = arith.addf %45, %50 : vector<128x64xf32>
    %c0_2 = arith.constant 0 : index
    %c0_3 = arith.constant 0 : index
    %52 = vector.load %arg5[%c0_2, %c0_3] : memref<8x128xf32, #tpu.memory_space<vmem>>, vector<8x128xf32>
    %cst_4 = arith.constant dense<0.000000e+00> : vector<8x64xf32>
    %53 = tpu.matmul %52, %51, %cst_4 {dimension_numbers = #tpu.dot_dimension_numbers<[1], [0], [0], [1], [0, 0, 1, 1], [], []>} : vector<8x128xf32>, vector<128x64xf32>, vector<8x64xf32> -> vector<8x64xf32>
    %c0_5 = arith.constant 0 : index
    %c0_6 = arith.constant 0 : index
    %c0_7 = arith.constant 0 : index
    %54 = vector.load %arg3[%c0_5, %c0_6, %c0_7] : memref<1x1x64xi32, #tpu.memory_space<vmem>>, vector<1x1x64xi32>
    %55 = vector.shape_cast %54 : vector<1x1x64xi32> to vector<1x64xi32>
    %c0_i32 = arith.constant 0 : i32
    %56 = vector.broadcast %c0_i32 : i32 to vector<1x64xi32>
    %57 = arith.cmpi eq, %55, %56 : vector<1x64xi32>
    %c1_i32 = arith.constant 1 : i32
    %58 = vector.broadcast %c1_i32 : i32 to vector<1x64xi32>
    %59 = arith.select %57, %58, %55 : vector<1x64xi1>, vector<1x64xi32>
    %c1_i32_8 = arith.constant 1 : i32
    %60 = vector.broadcast %c1_i32_8 : i32 to vector<1x64xi32>
    %61 = arith.cmpi sgt, %59, %60 : vector<1x64xi32>
    %c1_i32_9 = arith.constant 1 : i32
    %62 = vector.broadcast %c1_i32_9 : i32 to vector<1x64xi32>
    %63 = arith.subi %59, %62 : vector<1x64xi32>
    %64 = arith.select %61, %63, %59 : vector<1x64xi1>, vector<1x64xi32>
    %c0_i32_10 = arith.constant 0 : i32
    %c4_i32 = arith.constant 4 : i32
    %65 = vector.broadcast %c0_i32_10 : i32 to vector<1x64xi32>
    %66 = arith.maxsi %65, %64 : vector<1x64xi32>
    %67 = vector.broadcast %c4_i32 : i32 to vector<1x64xi32>
    %68 = arith.minsi %67, %66 : vector<1x64xi32>
    %69 = arith.sitofp %68 : vector<1x64xi32> to vector<1x64xf32>
    %70 = tpu.reciprocal %69 : vector<1x64xf32> -> vector<1x64xf32>
    %71 = vector.broadcast %70 : vector<1x64xf32> to vector<8x64xf32>
    %72 = arith.mulf %53, %71 : vector<8x64xf32>
    %c0_11 = arith.constant 0 : index
    %c0_12 = arith.constant 0 : index
    %c0_13 = arith.constant 0 : index
    %73 = vector.load %arg2[%c0_11, %c0_12, %c0_13] : memref<1x1x64xf32, #tpu.memory_space<vmem>>, vector<1x1x64xf32>
    %74 = vector.shape_cast %73 : vector<1x1x64xf32> to vector<1x64xf32>
    %75 = vector.broadcast %74 : vector<1x64xf32> to vector<8x64xf32>
    %76 = arith.addf %72, %75 : vector<8x64xf32>
    %c0_14 = arith.constant 0 : index
    %c0_15 = arith.constant 0 : index
    %c0_16 = arith.constant 0 : index
    %77 = vector.load %arg6[%c0_14, %c0_15, %c0_16] : memref<1x8x64xf32, #tpu.memory_space<vmem>>, vector<1x8x64xf32>
    %78 = vector.shape_cast %77 : vector<1x8x64xf32> to vector<8x64xf32>
    %79 = vector.shape_cast %76 : vector<8x64xf32> to vector<1x8x64xf32>
    tpu.vector_store %arg6[%c0_14, %c0_15, %c0_16], %79 {strides = array<i32>} : memref<1x8x64xf32, #tpu.memory_space<vmem>>, vector<1x8x64xf32>,
    return
  }
  func.func @transform_0(%arg0: i32, %arg1: i32) -> (i32, i32, i32) {
    %c0_i32 = arith.constant 0 : i32
    %c0_i32_0 = arith.constant 0 : i32
    return %arg0, %c0_i32, %arg1 : i32, i32, i32
  }
  func.func @transform_1(%arg0: i32, %arg1: i32) -> (i32, i32, i32) {
    %c0_i32 = arith.constant 0 : i32
    %c0_i32_0 = arith.constant 0 : i32
    return %arg0, %c0_i32, %arg1 : i32, i32, i32
  }
  func.func @transform_2(%arg0: i32, %arg1: i32) -> (i32, i32, i32) {
    %c0_i32 = arith.constant 0 : i32
    %c0_i32_0 = arith.constant 0 : i32
    return %arg0, %c0_i32, %arg1 : i32, i32, i32
  }
  func.func @transform_3(%arg0: i32, %arg1: i32) -> (i32, i32) {
    %c0_i32 = arith.constant 0 : i32
    %c0_i32_0 = arith.constant 0 : i32
    %c0_i32_1 = arith.constant 0 : i32
    return %c0_i32, %c0_i32_0 : i32, i32
  }
  func.func @transform_4(%arg0: i32, %arg1: i32) -> (i32, i32, i32) {
    %c0_i32 = arith.constant 0 : i32
    %c0_i32_0 = arith.constant 0 : i32
    return %arg0, %c0_i32, %arg1 : i32, i32, i32
  }
}

</mosaic_0001>

<llo_original>
// kernel: tpu_custom_call.1
$region0: #{tpu_custom_call.1}
  #allocation0 [shape = 'u32[]', space=smem, size = 0x4, offset = 0x4, fixed_abs, tag = 'smem constant byte address 0x4 - core index']
  #allocation1 [shape = 'u32[144,128]{1,0:T(1,128)}', space=vmem, size = 0x12000, scoped, tag = 'internal scratch']
  %s0 = inlined_call_operand.hbm [shape: f32[2,1,64], index: 0, kind: input, shape index: {}]
  %s1 = inlined_call_operand.hbm [shape: s32[2,1,64], index: 1, kind: input, shape index: {}]
  %s2 = inlined_call_operand.hbm [shape: s32[2,8,64], index: 2, kind: input, shape index: {}]
  %s3 = inlined_call_operand.hbm [shape: f32[8,128], index: 3, kind: input, shape index: {}]
  %s4 = inlined_call_operand.hbm [shape: f32[2,8,64], index: 4, kind: output, shape index: {}]
  %s5 = sld [smem:[#allocation0]]
  $region65: #{tpu_custom_call.1} parent=0
    _
  %s7 = ssub.s32 1, %s5
  %s8 = scalar_select 0, %s7, %s5
  $region1: #{tpu_custom_call.1} parent=0
    #allocation2 [shape = 'u8[1024]{0}', space=vmem, size = 0x400, scoped, tag = 'input window, operand 0']
    #allocation3 [shape = 's32[2]{0}', space=sflag, size = 0x8, scoped, tag = 'scoped memory for tpu_custom_call.1']
    #allocation4 [shape = 's32[2]{0}', space=sflag, size = 0x8, scoped, tag = 'scoped memory for tpu_custom_call.1']
    #allocation5 [shape = 'u8[1024]{0}', space=vmem, size = 0x400, scoped, tag = 'input window, operand 1']
    #allocation6 [shape = 's32[2]{0}', space=sflag, size = 0x8, scoped, tag = 'scoped memory for tpu_custom_call.1']
    #allocation7 [shape = 'u8[8192]{0}', space=vmem, size = 0x2000, scoped, tag = 'input window, operand 2']
    #allocation8 [shape = 'u8[4096]{0}', space=vmem, size = 0x1000, scoped, tag = 'input window, operand 3, single buffered']
    #allocation9 [shape = 's32[1]{0}', space=sflag, size = 0x4, scoped, tag = 'scoped memory for tpu_custom_call.1']
    #allocation10 [shape = 'u8[8192]{0}', space=vmem, size = 0x2000, scoped, tag = 'output window, operand 0']
    %9 = vsyncpa [#allocation3], 0
    %s10 = scalar_lea.sflag [#allocation3], 1
    %11 = vsyncpa %s10, 0
    %12 = vsyncpa [#allocation6], 0
    %s13 = scalar_lea.sflag [#allocation6], 1
    %14 = vsyncpa %s13, 0
    %15 = vsyncpa [#allocation9], 0
    %16 = vsyncpa [#allocation4], 0
    %s17 = scalar_lea.sflag [#allocation4], 1
    %18 = vsyncpa %s17, 0
    loop: start=0, step=1, limit=4
    $region2: #{tpu_custom_call.1} parent=1 // loop_pre_header
      _
    $region3: #{tpu_custom_call.1} parent=1 // loop_header
      %s20 = sphi 0, %s24
      %p21 = scmp.ge.s32.totalorder %s20, 4
      %s27 = sphi 0, %s39
      %s28 = sphi 0, %s35
      %s29 = sphi 0, %s27
      %s30 = sphi 0, %s28
      %s31 = sphi 0, %s29
      %s32 = sphi 0, %s30
      %s44 = sphi 0, %s46
      %s47 = sphi 0, %s44
      %s48 = sphi 0, %s47
      %s64 = sphi 0, %s48
      %s72 = sphi 0, %s74
      %s75 = sphi 0, %s72
      %s76 = sphi 0, %s75
      %s92 = sphi 0, %s76
      %s100 = sphi 0, %s102
      %s103 = sphi 0, %s100
      %s104 = sphi 0, %s103
      %s120 = sphi 0, %s104
      %s124 = sphi 0, %s124
      %s126 = sphi 0, %s124
      %s127 = sphi 0, %s126
      %s141 = sphi 0, %s127
      %s149 = sphi 0, %s151
      %s152 = sphi 0, %s149
      %s153 = sphi 0, %s152
      %s169 = sphi 0, %s153
    $region4: #{tpu_custom_call.1} parent=1 // loop_header_branch
      %23 = sbr.rel (%p21) target = $region8
    $region5: #{tpu_custom_call.1} parent=1 // loop_body
      %s25 = ssub.s32 %s20, 1
      %s26 = ssub.s32 %s20, 2
      %s33 = sadd.s32 1, %s28
      %p34 = scmp.ge.s32.totalorder %s33, 1
      %s35 = scalar_select %p34, 0, %s33
      %s36 = sadd.s32 1, %s27
      %s37 = scalar_select %p34, %s36, %s27
      %p38 = scmp.ge.s32.totalorder %s37, 2
      %s39 = scalar_select %p38, 0, %s37
      %s40 = ssub.s32 %s27, %s39
      %s41 = ssub.s32 %s28, %s35
      %s42 = sor.u32 %s40, %s41
      %p43 = scmp.eq.s32.totalorder %s42, 0
      %s45 = sadd.s32 %s44, 1
      %s46 = scalar_select %p43, %s44, %s45
      %p49 = pneg %p43
      %p50 = scmp.eq.s32.totalorder %s20, 1
      %p51 = por %p49, %p50
      %p52 = scmp.ne.s32.totalorder %s44, %s47
      %p53 = scmp.eq.s32.totalorder %s20, 0
      %p54 = por %p52, %p53
      %p55 = scmp.ne.s32.totalorder %s44, %s47
      %p56 = scmp.eq.s32.totalorder %s25, 1
      %p57 = por %p55, %p56
      %p58 = scmp.ne.s32.totalorder %s47, %s48
      %p59 = scmp.eq.s32.totalorder %s25, 0
      %p60 = por %p58, %p59
      %p61 = scmp.ne.s32.totalorder %s47, %s48
      %p62 = scmp.eq.s32.totalorder %s26, 1
      %p63 = por %p61, %p62
      %p65 = scmp.ne.s32.totalorder %s48, %s64
      %p66 = scmp.eq.s32.totalorder %s26, 0
      %p67 = por %p65, %p66
      %s68 = ssub.s32 %s27, %s39
      %s69 = ssub.s32 %s28, %s35
      %s70 = sor.u32 %s68, %s69
      %p71 = scmp.eq.s32.totalorder %s70, 0
      %s73 = sadd.s32 %s72, 1
      %s74 = scalar_select %p71, %s72, %s73
      %p77 = pneg %p71
      %p78 = scmp.eq.s32.totalorder %s20, 1
      %p79 = por %p77, %p78
      %p80 = scmp.ne.s32.totalorder %s72, %s75
      %p81 = scmp.eq.s32.totalorder %s20, 0
      %p82 = por %p80, %p81
      %p83 = scmp.ne.s32.totalorder %s72, %s75
      %p84 = scmp.eq.s32.totalorder %s25, 1
      %p85 = por %p83, %p84
      %p86 = scmp.ne.s32.totalorder %s75, %s76
      %p87 = scmp.eq.s32.totalorder %s25, 0
      %p88 = por %p86, %p87
      %p89 = scmp.ne.s32.totalorder %s75, %s76
      %p90 = scmp.eq.s32.totalorder %s26, 1
      %p91 = por %p89, %p90
      %p93 = scmp.ne.s32.totalorder %s76, %s92
      %p94 = scmp.eq.s32.totalorder %s26, 0
      %p95 = por %p93, %p94
      %s96 = ssub.s32 %s27, %s39
      %s97 = ssub.s32 %s28, %s35
      %s98 = sor.u32 %s96, %s97
      %p99 = scmp.eq.s32.totalorder %s98, 0
      %s101 = sadd.s32 %s100, 1
      %s102 = scalar_select %p99, %s100, %s101
      %p105 = pneg %p99
      %p106 = scmp.eq.s32.totalorder %s20, 1
      %p107 = por %p105, %p106
      %p108 = scmp.ne.s32.totalorder %s100, %s103
      %p109 = scmp.eq.s32.totalorder %s20, 0
      %p110 = por %p108, %p109
      %p111 = scmp.ne.s32.totalorder %s100, %s103
      %p112 = scmp.eq.s32.totalorder %s25, 1
      %p113 = por %p111, %p112
      %p114 = scmp.ne.s32.totalorder %s103, %s104
      %p115 = scmp.eq.s32.totalorder %s25, 0
      %p116 = por %p114, %p115
      %p117 = scmp.ne.s32.totalorder %s103, %s104
      %p118 = scmp.eq.s32.totalorder %s26, 1
      %p119 = por %p117, %p118
      %p121 = scmp.ne.s32.totalorder %s104, %s120
      %p122 = scmp.eq.s32.totalorder %s26, 0
      %p123 = por %p121, %p122
      %s125 = sadd.s32 %s124, 1
      %p128 = scmp.eq.s32.totalorder %s20, 1
      %p129 = scmp.ne.s32.totalorder %s124, %s126
      %p130 = scmp.eq.s32.totalorder %s20, 0
      %p131 = por %p129, %p130
      %p132 = scmp.ne.s32.totalorder %s124, %s126
      %p133 = scmp.eq.s32.totalorder %s25, 1
      %p134 = por %p132, %p133
      %p135 = scmp.ne.s32.totalorder %s126, %s127
      %p136 = scmp.eq.s32.totalorder %s25, 0
      %p137 = por %p135, %p136
      %p138 = scmp.ne.s32.totalorder %s126, %s127
      %p139 = scmp.eq.s32.totalorder %s26, 1
      %p140 = por %p138, %p139
      %p142 = scmp.ne.s32.totalorder %s127, %s141
      %p143 = scmp.eq.s32.totalorder %s26, 0
      %p144 = por %p142, %p143
      %s145 = ssub.s32 %s27, %s39
      %s146 = ssub.s32 %s28, %s35
      %s147 = sor.u32 %s145, %s146
      %p148 = scmp.eq.s32.totalorder %s147, 0
      %s150 = sadd.s32 %s149, 1
      %s151 = scalar_select %p148, %s149, %s150
      %p154 = pneg %p148
      %p155 = scmp.eq.s32.totalorder %s20, 1
      %p156 = por %p154, %p155
      %p157 = scmp.ne.s32.totalorder %s149, %s152
      %p158 = scmp.eq.s32.totalorder %s20, 0
      %p159 = por %p157, %p158
      %p160 = scmp.ne.s32.totalorder %s149, %s152
      %p161 = scmp.eq.s32.totalorder %s25, 1
      %p162 = por %p160, %p161
      %p163 = scmp.ne.s32.totalorder %s152, %s153
      %p164 = scmp.eq.s32.totalorder %s25, 0
      %p165 = por %p163, %p164
      %p166 = scmp.ne.s32.totalorder %s152, %s153
      %p167 = scmp.eq.s32.totalorder %s26, 1
      %p168 = por %p166, %p167
      %p170 = scmp.ne.s32.totalorder %s153, %s169
      %p171 = scmp.eq.s32.totalorder %s26, 0
      %p172 = por %p170, %p171
      %p173 = scmp.le.s32.totalorder 1, %s20
      %p174 = scmp.lt.s32.totalorder %s20, 3
      %p175 = pnand %p173, %p174
      %p176 = pneg %p175
      // Predicated region
      $region9: #{tpu_custom_call.1} parent=5 // pred_check
        _
      $region10: #{tpu_custom_call.1} parent=5 // pred_check_branch
        %178 = sbr.rel (%p175) target = $region12
      $region11: #{tpu_custom_call.1} parent=5 // pred_region
        %s179 = ssub.s32 %s20, 1
        // Predicated region
        $region13: #{tpu_custom_call.1} parent=11 // pred_check
          %p180 = pneg %p137
        $region14: #{tpu_custom_call.1} parent=11 // pred_check_branch
          %182 = sbr.rel (%p180) target = $region16
        $region15: #{tpu_custom_call.1} parent=11 // pred_region
          %s184 = ssub.s32 128, 128
          %185 = vsyncadd [#allocation9], %s184
          %s187 = sshll.u32 [#allocation8], 4
          %s188 = int_to_ptr.vmem [resolvable:$true] %s187
          %190 = dma.hbm_to_vmem [thread:$0]  %s3, 128, %s188, [#allocation9]
        $region16: #{tpu_custom_call.1} parent=11 // pred_fallthru
          _
      $region12: #{tpu_custom_call.1} parent=5 // pred_fallthru
        _
      %p191 = scmp.lt.s32.totalorder %s20, 2
      // Predicated region
      $region17: #{tpu_custom_call.1} parent=5 // pred_check
        %p192 = pneg %p191
      $region18: #{tpu_custom_call.1} parent=5 // pred_check_branch
        %194 = sbr.rel (%p192) target = $region20
      $region19: #{tpu_custom_call.1} parent=5 // pred_region
        // Predicated region
        $region21: #{tpu_custom_call.1} parent=19 // pred_check
          %p195 = pneg %p54
        $region22: #{tpu_custom_call.1} parent=19 // pred_check_branch
          %197 = sbr.rel (%p195) target = $region24
        $region23: #{tpu_custom_call.1} parent=19 // pred_region
          %s198 = sand.u32 %s44, 1
          %s199 = scalar_lea.sflag [#allocation3], %s198
          %s200 = sand.u32 %s44, 1
          %s201 = scalar_lea.vmem [#allocation2], %s200
          %s203 = ssub.s32 16, 16
          %204 = vsyncadd %s199, %s203
          %s205 = sadd.s32 %s28, %s27
          %s206 = smul.addr %s205, 16
          %s207 = scalar_lea.hbm %s0, %s206
          %s209 = sshll.u32 %s201, 4
          %s210 = int_to_ptr.vmem [resolvable:$true] %s209
          %212 = dma.hbm_to_vmem [thread:$0]  %s207, 16, %s210, %s199
        $region24: #{tpu_custom_call.1} parent=19 // pred_fallthru
          _
        // Predicated region
        $region25: #{tpu_custom_call.1} parent=19 // pred_check
          %p213 = pneg %p82
        $region26: #{tpu_custom_call.1} parent=19 // pred_check_branch
          %215 = sbr.rel (%p213) target = $region28
        $region27: #{tpu_custom_call.1} parent=19 // pred_region
          %s216 = sand.u32 %s20, 1
          %s217 = scalar_lea.sflag [#allocation6], %s216
          %s218 = sand.u32 %s72, 1
          %s219 = scalar_lea.vmem [#allocation5], %s218
          %s221 = ssub.s32 16, 16
          %222 = vsyncadd %s217, %s221
          %s223 = sadd.s32 %s28, %s27
          %s224 = smul.addr %s223, 16
          %s225 = scalar_lea.hbm %s1, %s224
          %s227 = sshll.u32 %s219, 4
          %s228 = int_to_ptr.vmem [resolvable:$true] %s227
          %230 = dma.hbm_to_vmem [thread:$0]  %s225, 16, %s228, %s217
        $region28: #{tpu_custom_call.1} parent=19 // pred_fallthru
          _
        // Predicated region
        $region29: #{tpu_custom_call.1} parent=19 // pred_check
          %p231 = pneg %p110
        $region30: #{tpu_custom_call.1} parent=19 // pred_check_branch
          %233 = sbr.rel (%p231) target = $region32
        $region31: #{tpu_custom_call.1} parent=19 // pred_region
          %s234 = sand.u32 %s20, 1
          %s235 = scalar_lea.sflag [#allocation6], %s234
          %s236 = sand.u32 %s100, 1
          %s237 = smul.addr %s236, 8
          %s238 = scalar_lea.vmem [#allocation7], %s237
          %s240 = ssub.s32 128, 128
          %241 = vsyncadd %s235, %s240
          %s242 = sadd.s32 %s28, %s27
          %s243 = smul.addr %s242, 128
          %s244 = scalar_lea.hbm %s2, %s243
          %s246 = sshll.u32 %s238, 4
          %s247 = int_to_ptr.vmem [resolvable:$true] %s246
          %249 = dma.hbm_to_vmem [thread:$0]  %s244, 128, %s247, %s235
        $region32: #{tpu_custom_call.1} parent=19 // pred_fallthru
          _
      $region20: #{tpu_custom_call.1} parent=5 // pred_fallthru
        _
      %p250 = scmp.le.s32.totalorder 1, %s20
      %p251 = scmp.lt.s32.totalorder %s20, 3
      %p252 = pnand %p250, %p251
      %p253 = pneg %p252
      // Predicated region
      $region33: #{tpu_custom_call.1} parent=5 // pred_check
        _
      $region34: #{tpu_custom_call.1} parent=5 // pred_check_branch
        %255 = sbr.rel (%p252) target = $region36
      $region35: #{tpu_custom_call.1} parent=5 // pred_region
        %s256 = ssub.s32 %s20, 1
        %s257 = sand.u32 %s47, 1
        %s258 = scalar_lea.sflag [#allocation3], %s257
        %s259 = sand.u32 %s47, 1
        %s260 = scalar_lea.vmem [#allocation2], %s259
        // Predicated region
        $region37: #{tpu_custom_call.1} parent=35 // pred_check
          %p261 = pneg %p60
        $region38: #{tpu_custom_call.1} parent=35 // pred_check_branch
          %263 = sbr.rel (%p261) target = $region40
        $region39: #{tpu_custom_call.1} parent=35 // pred_region
          %264 = dma.done %s258, 16
        $region40: #{tpu_custom_call.1} parent=35 // pred_fallthru
          _
        %s265 = sand.u32 %s25, 1
        %s266 = scalar_lea.sflag [#allocation6], %s265
        %s267 = sand.u32 %s75, 1
        %s268 = scalar_lea.vmem [#allocation5], %s267
        // Predicated region
        $region41: #{tpu_custom_call.1} parent=35 // pred_check
          %p269 = pneg %p88
        $region42: #{tpu_custom_call.1} parent=35 // pred_check_branch
          %271 = sbr.rel (%p269) target = $region44
        $region43: #{tpu_custom_call.1} parent=35 // pred_region
          %272 = dma.done %s266, 16
        $region44: #{tpu_custom_call.1} parent=35 // pred_fallthru
          _
        %s273 = sand.u32 %s25, 1
        %s274 = scalar_lea.sflag [#allocation6], %s273
        %s275 = sand.u32 %s103, 1
        %s276 = smul.addr %s275, 8
        %s277 = scalar_lea.vmem [#allocation7], %s276
        // Predicated region
        $region45: #{tpu_custom_call.1} parent=35 // pred_check
          %p278 = pneg %p116
        $region46: #{tpu_custom_call.1} parent=35 // pred_check_branch
          %280 = sbr.rel (%p278) target = $region48
        $region47: #{tpu_custom_call.1} parent=35 // pred_region
          %281 = dma.done %s274, 128
        $region48: #{tpu_custom_call.1} parent=35 // pred_fallthru
          _
        // Predicated region
        $region49: #{tpu_custom_call.1} parent=35 // pred_check
          %p282 = pneg %p137
        $region50: #{tpu_custom_call.1} parent=35 // pred_check_branch
          %284 = sbr.rel (%p282) target = $region52
        $region51: #{tpu_custom_call.1} parent=35 // pred_region
          %285 = dma.done [#allocation9], 128
        $region52: #{tpu_custom_call.1} parent=35 // pred_fallthru
          _
        %s286 = sand.u32 %s47, 1
        %s287 = scalar_lea.sflag [#allocation3], %s286
        %s288 = sand.u32 %s47, 1
        %s289 = scalar_lea.vmem [#allocation2], %s288
        %p290 = pneg %p60
        %p291 = pneg %p57
        %s292 = sand.u32 %s25, 1
        %s293 = scalar_lea.sflag [#allocation6], %s292
        %s294 = sand.u32 %s75, 1
        %s295 = scalar_lea.vmem [#allocation5], %s294
        %p296 = pneg %p88
        %p297 = pneg %p85
        %s298 = sand.u32 %s25, 1
        %s299 = scalar_lea.sflag [#allocation6], %s298
        %s300 = sand.u32 %s103, 1
        %s301 = smul.addr %s300, 8
        %s302 = scalar_lea.vmem [#allocation7], %s301
        %p303 = pneg %p116
        %p304 = pneg %p113
        %p305 = pneg %p137
        %p306 = pneg %p134
        %p307 = pneg %p165
        %p308 = pneg %p162
        %s309 = sand.u32 %s152, 1
        %s310 = scalar_lea.sflag [#allocation4], %s309
        %s311 = sand.u32 %s152, 1
        %s312 = smul.addr %s311, 8
        %s313 = scalar_lea.vmem [#allocation10], %s312
        %v314 = vld [vmem:[%s277] sm:$0xff]
        %v315 = vlaneseq
        %v316 = vshrl.u32 %v315, 7
        %v317 = vadd.s32 %v316, 8
        %v318 = vadd.s32 %v316, 16
        %v319 = vadd.s32 %v316, 24
        %v320 = vadd.s32 %v316, 32
        %v321 = vadd.s32 %v316, 40
        %v322 = vadd.s32 %v316, 48
        %v323 = vadd.s32 %v316, 56
        %v324 = vadd.s32 %v316, 64
        %v325 = vadd.s32 %v316, 72
        %v326 = vadd.s32 %v316, 80
        %v327 = vadd.s32 %v316, 88
        %v328 = vadd.s32 %v316, 96
        %v329 = vadd.s32 %v316, 104
        %v330 = vadd.s32 %v316, 112
        %v331 = vadd.s32 %v316, 120
        %v332 = vlaneseq
        %v333 = vshrl.u32 %v332, 7
        %v334 = vsub.s32 0, %v333
        %v335 = vrot.slane %v314, %v334
        %vm336 = vcmp.eq.s32.totalorder %v335, %v316
        %vm337 = vcmp.eq.s32.totalorder %v335, %v317
        %vm338 = vcmp.eq.s32.totalorder %v335, %v318
        %vm339 = vcmp.eq.s32.totalorder %v335, %v319
        %vm340 = vcmp.eq.s32.totalorder %v335, %v320
        %vm341 = vcmp.eq.s32.totalorder %v335, %v321
        %vm342 = vcmp.eq.s32.totalorder %v335, %v322
        %vm343 = vcmp.eq.s32.totalorder %v335, %v323
        %vm344 = vcmp.eq.s32.totalorder %v335, %v324
        %vm345 = vcmp.eq.s32.totalorder %v335, %v325
        %vm346 = vcmp.eq.s32.totalorder %v335, %v326
        %vm347 = vcmp.eq.s32.totalorder %v335, %v327
        %vm348 = vcmp.eq.s32.totalorder %v335, %v328
        %vm349 = vcmp.eq.s32.totalorder %v335, %v329
        %vm350 = vcmp.eq.s32.totalorder %v335, %v330
        %vm351 = vcmp.eq.s32.totalorder %v335, %v331
        %v352 = vsel %vm336, 1, 0
        %v353 = vsel %vm337, 1, 0
        %v354 = vsel %vm338, 1, 0
        %v355 = vsel %vm339, 1, 0
        %v356 = vsel %vm340, 1, 0
        %v357 = vsel %vm341, 1, 0
        %v358 = vsel %vm342, 1, 0
        %v359 = vsel %vm343, 1, 0
        %v360 = vsel %vm344, 1, 0
        %v361 = vsel %vm345, 1, 0
        %v362 = vsel %vm346, 1, 0
        %v363 = vsel %vm347, 1, 0
        %v364 = vsel %vm348, 1, 0
        %v365 = vsel %vm349, 1, 0
        %v366 = vsel %vm350, 1, 0
        %v367 = vsel %vm351, 1, 0
        %v368 = vcvt.s32.f32 %v352
        %v369 = vcvt.s32.f32 %v353
        %v370 = vcvt.s32.f32 %v354
        %v371 = vcvt.s32.f32 %v355
        %v372 = vcvt.s32.f32 %v356
        %v373 = vcvt.s32.f32 %v357
        %v374 = vcvt.s32.f32 %v358
        %v375 = vcvt.s32.f32 %v359
        %v376 = vcvt.s32.f32 %v360
        %v377 = vcvt.s32.f32 %v361
        %v378 = vcvt.s32.f32 %v362
        %v379 = vcvt.s32.f32 %v363
        %v380 = vcvt.s32.f32 %v364
        %v381 = vcvt.s32.f32 %v365
        %v382 = vcvt.s32.f32 %v366
        %v383 = vcvt.s32.f32 %v367
        %v384 = vadd.f32 %v368, 0.0
        %v385 = vadd.f32 %v369, 0.0
        %v386 = vadd.f32 %v370, 0.0
        %v387 = vadd.f32 %v371, 0.0
        %v388 = vadd.f32 %v372, 0.0
        %v389 = vadd.f32 %v373, 0.0
        %v390 = vadd.f32 %v374, 0.0
        %v391 = vadd.f32 %v375, 0.0
        %v392 = vadd.f32 %v376, 0.0
        %v393 = vadd.f32 %v377, 0.0
        %v394 = vadd.f32 %v378, 0.0
        %v395 = vadd.f32 %v379, 0.0
        %v396 = vadd.f32 %v380, 0.0
        %v397 = vadd.f32 %v381, 0.0
        %v398 = vadd.f32 %v382, 0.0
        %v399 = vadd.f32 %v383, 0.0
        %v400 = vlaneseq
        %v401 = vshrl.u32 %v400, 7
        %v402 = vsub.s32 1, %v401
        %v403 = vrot.slane %v314, %v402
        %vm404 = vcmp.eq.s32.totalorder %v403, %v316
        %vm405 = vcmp.eq.s32.totalorder %v403, %v317
        %vm406 = vcmp.eq.s32.totalorder %v403, %v318
        %vm407 = vcmp.eq.s32.totalorder %v403, %v319
        %vm408 = vcmp.eq.s32.totalorder %v403, %v320
        %vm409 = vcmp.eq.s32.totalorder %v403, %v321
        %vm410 = vcmp.eq.s32.totalorder %v403, %v322
        %vm411 = vcmp.eq.s32.totalorder %v403, %v323
        %vm412 = vcmp.eq.s32.totalorder %v403, %v324
        %vm413 = vcmp.eq.s32.totalorder %v403, %v325
        %vm414 = vcmp.eq.s32.totalorder %v403, %v326
        %vm415 = vcmp.eq.s32.totalorder %v403, %v327
        %vm416 = vcmp.eq.s32.totalorder %v403, %v328
        %vm417 = vcmp.eq.s32.totalorder %v403, %v329
        %vm418 = vcmp.eq.s32.totalorder %v403, %v330
        %vm419 = vcmp.eq.s32.totalorder %v403, %v331
        %v420 = vsel %vm404, 1, 0
        %v421 = vsel %vm405, 1, 0
        %v422 = vsel %vm406, 1, 0
        %v423 = vsel %vm407, 1, 0
        %v424 = vsel %vm408, 1, 0
        %v425 = vsel %vm409, 1, 0
        %v426 = vsel %vm410, 1, 0
        %v427 = vsel %vm411, 1, 0
        %v428 = vsel %vm412, 1, 0
        %v429 = vsel %vm413, 1, 0
        %v430 = vsel %vm414, 1, 0
        %v431 = vsel %vm415, 1, 0
        %v432 = vsel %vm416, 1, 0
        %v433 = vsel %vm417, 1, 0
        %v434 = vsel %vm418, 1, 0
        %v435 = vsel %vm419, 1, 0
        %v436 = vcvt.s32.f32 %v420
        %v437 = vcvt.s32.f32 %v421
        %v438 = vcvt.s32.f32 %v422
        %v439 = vcvt.s32.f32 %v423
        %v440 = vcvt.s32.f32 %v424
        %v441 = vcvt.s32.f32 %v425
        %v442 = vcvt.s32.f32 %v426
        %v443 = vcvt.s32.f32 %v427
        %v444 = vcvt.s32.f32 %v428
        %v445 = vcvt.s32.f32 %v429
        %v446 = vcvt.s32.f32 %v430
        %v447 = vcvt.s32.f32 %v431
        %v448 = vcvt.s32.f32 %v432
        %v449 = vcvt.s32.f32 %v433
        %v450 = vcvt.s32.f32 %v434
        %v451 = vcvt.s32.f32 %v435
        %v452 = vadd.f32 %v384, %v436
        %v453 = vadd.f32 %v385, %v437
        %v454 = vadd.f32 %v386, %v438
        %v455 = vadd.f32 %v387, %v439
        %v456 = vadd.f32 %v388, %v440
        %v457 = vadd.f32 %v389, %v441
        %v458 = vadd.f32 %v390, %v442
        %v459 = vadd.f32 %v391, %v443
        %v460 = vadd.f32 %v392, %v444
        %v461 = vadd.f32 %v393, %v445
        %v462 = vadd.f32 %v394, %v446
        %v463 = vadd.f32 %v395, %v447
        %v464 = vadd.f32 %v396, %v448
        %v465 = vadd.f32 %v397, %v449
        %v466 = vadd.f32 %v398, %v450
        %v467 = vadd.f32 %v399, %v451
        %v468 = vlaneseq
        %v469 = vshrl.u32 %v468, 7
        %v470 = vsub.s32 2, %v469
        %v471 = vrot.slane %v314, %v470
        %vm472 = vcmp.eq.s32.totalorder %v471, %v316
        %vm473 = vcmp.eq.s32.totalorder %v471, %v317
        %vm474 = vcmp.eq.s32.totalorder %v471, %v318
        %vm475 = vcmp.eq.s32.totalorder %v471, %v319
        %vm476 = vcmp.eq.s32.totalorder %v471, %v320
        %vm477 = vcmp.eq.s32.totalorder %v471, %v321
        %vm478 = vcmp.eq.s32.totalorder %v471, %v322
        %vm479 = vcmp.eq.s32.totalorder %v471, %v323
        %vm480 = vcmp.eq.s32.totalorder %v471, %v324
        %vm481 = vcmp.eq.s32.totalorder %v471, %v325
        %vm482 = vcmp.eq.s32.totalorder %v471, %v326
        %vm483 = vcmp.eq.s32.totalorder %v471, %v327
        %vm484 = vcmp.eq.s32.totalorder %v471, %v328
        %vm485 = vcmp.eq.s32.totalorder %v471, %v329
        %vm486 = vcmp.eq.s32.totalorder %v471, %v330
        %vm487 = vcmp.eq.s32.totalorder %v471, %v331
        %v488 = vsel %vm472, 1, 0
        %v489 = vsel %vm473, 1, 0
        %v490 = vsel %vm474, 1, 0
        %v491 = vsel %vm475, 1, 0
        %v492 = vsel %vm476, 1, 0
        %v493 = vsel %vm477, 1, 0
        %v494 = vsel %vm478, 1, 0
        %v495 = vsel %vm479, 1, 0
        %v496 = vsel %vm480, 1, 0
        %v497 = vsel %vm481, 1, 0
        %v498 = vsel %vm482, 1, 0
        %v499 = vsel %vm483, 1, 0
        %v500 = vsel %vm484, 1, 0
        %v501 = vsel %vm485, 1, 0
        %v502 = vsel %vm486, 1, 0
        %v503 = vsel %vm487, 1, 0
        %v504 = vcvt.s32.f32 %v488
        %v505 = vcvt.s32.f32 %v489
        %v506 = vcvt.s32.f32 %v490
        %v507 = vcvt.s32.f32 %v491
        %v508 = vcvt.s32.f32 %v492
        %v509 = vcvt.s32.f32 %v493
        %v510 = vcvt.s32.f32 %v494
        %v511 = vcvt.s32.f32 %v495
        %v512 = vcvt.s32.f32 %v496
        %v513 = vcvt.s32.f32 %v497
        %v514 = vcvt.s32.f32 %v498
        %v515 = vcvt.s32.f32 %v499
        %v516 = vcvt.s32.f32 %v500
        %v517 = vcvt.s32.f32 %v501
        %v518 = vcvt.s32.f32 %v502
        %v519 = vcvt.s32.f32 %v503
        %v520 = vadd.f32 %v452, %v504
        %v521 = vadd.f32 %v453, %v505
        %v522 = vadd.f32 %v454, %v506
        %v523 = vadd.f32 %v455, %v507
        %v524 = vadd.f32 %v456, %v508
        %v525 = vadd.f32 %v457, %v509
        %v526 = vadd.f32 %v458, %v510
        %v527 = vadd.f32 %v459, %v511
        %v528 = vadd.f32 %v460, %v512
        %v529 = vadd.f32 %v461, %v513
        %v530 = vadd.f32 %v462, %v514
        %v531 = vadd.f32 %v463, %v515
        %v532 = vadd.f32 %v464, %v516
        %v533 = vadd.f32 %v465, %v517
        %v534 = vadd.f32 %v466, %v518
        %v535 = vadd.f32 %v467, %v519
        %v536 = vlaneseq
        %v537 = vshrl.u32 %v536, 7
        %v538 = vsub.s32 3, %v537
        %v539 = vrot.slane %v314, %v538
        %vm540 = vcmp.eq.s32.totalorder %v539, %v316
        %vm541 = vcmp.eq.s32.totalorder %v539, %v317
        %vm542 = vcmp.eq.s32.totalorder %v539, %v318
        %vm543 = vcmp.eq.s32.totalorder %v539, %v319
        %vm544 = vcmp.eq.s32.totalorder %v539, %v320
        %vm545 = vcmp.eq.s32.totalorder %v539, %v321
        %vm546 = vcmp.eq.s32.totalorder %v539, %v322
        %vm547 = vcmp.eq.s32.totalorder %v539, %v323
        %vm548 = vcmp.eq.s32.totalorder %v539, %v324
        %vm549 = vcmp.eq.s32.totalorder %v539, %v325
        %vm550 = vcmp.eq.s32.totalorder %v539, %v326
        %vm551 = vcmp.eq.s32.totalorder %v539, %v327
        %vm552 = vcmp.eq.s32.totalorder %v539, %v328
        %vm553 = vcmp.eq.s32.totalorder %v539, %v329
        %vm554 = vcmp.eq.s32.totalorder %v539, %v330
        %vm555 = vcmp.eq.s32.totalorder %v539, %v331
        %v556 = vsel %vm540, 1, 0
        %v557 = vsel %vm541, 1, 0
        %v558 = vsel %vm542, 1, 0
        %v559 = vsel %vm543, 1, 0
        %v560 = vsel %vm544, 1, 0
        %v561 = vsel %vm545, 1, 0
        %v562 = vsel %vm546, 1, 0
        %v563 = vsel %vm547, 1, 0
        %v564 = vsel %vm548, 1, 0
        %v565 = vsel %vm549, 1, 0
        %v566 = vsel %vm550, 1, 0
        %v567 = vsel %vm551, 1, 0
        %v568 = vsel %vm552, 1, 0
        %v569 = vsel %vm553, 1, 0
        %v570 = vsel %vm554, 1, 0
        %v571 = vsel %vm555, 1, 0
        %v572 = vcvt.s32.f32 %v556
        %v573 = vcvt.s32.f32 %v557
        %v574 = vcvt.s32.f32 %v558
        %v575 = vcvt.s32.f32 %v559
        %v576 = vcvt.s32.f32 %v560
        %v577 = vcvt.s32.f32 %v561
        %v578 = vcvt.s32.f32 %v562
        %v579 = vcvt.s32.f32 %v563
        %v580 = vcvt.s32.f32 %v564
        %v581 = vcvt.s32.f32 %v565
        %v582 = vcvt.s32.f32 %v566
        %v583 = vcvt.s32.f32 %v567
        %v584 = vcvt.s32.f32 %v568
        %v585 = vcvt.s32.f32 %v569
        %v586 = vcvt.s32.f32 %v570
        %v587 = vcvt.s32.f32 %v571
        %v588 = vadd.f32 %v520, %v572
        %v589 = vadd.f32 %v521, %v573
        %v590 = vadd.f32 %v522, %v574
        %v591 = vadd.f32 %v523, %v575
        %v592 = vadd.f32 %v524, %v576
        %v593 = vadd.f32 %v525, %v577
        %v594 = vadd.f32 %v526, %v578
        %v595 = vadd.f32 %v527, %v579
        %v596 = vadd.f32 %v528, %v580
        %v597 = vadd.f32 %v529, %v581
        %v598 = vadd.f32 %v530, %v582
        %v599 = vadd.f32 %v531, %v583
        %v600 = vadd.f32 %v532, %v584
        %v601 = vadd.f32 %v533, %v585
        %v602 = vadd.f32 %v534, %v586
        %v603 = vadd.f32 %v535, %v587
        %v604 = vlaneseq
        %v605 = vshrl.u32 %v604, 7
        %v606 = vsub.s32 4, %v605
        %v607 = vrot.slane %v314, %v606
        %vm608 = vcmp.eq.s32.totalorder %v607, %v316
        %vm609 = vcmp.eq.s32.totalorder %v607, %v317
        %vm610 = vcmp.eq.s32.totalorder %v607, %v318
        %vm611 = vcmp.eq.s32.totalorder %v607, %v319
        %vm612 = vcmp.eq.s32.totalorder %v607, %v320
        %vm613 = vcmp.eq.s32.totalorder %v607, %v321
        %vm614 = vcmp.eq.s32.totalorder %v607, %v322
        %vm615 = vcmp.eq.s32.totalorder %v607, %v323
        %vm616 = vcmp.eq.s32.totalorder %v607, %v324
        %vm617 = vcmp.eq.s32.totalorder %v607, %v325
        %vm618 = vcmp.eq.s32.totalorder %v607, %v326
        %vm619 = vcmp.eq.s32.totalorder %v607, %v327
        %vm620 = vcmp.eq.s32.totalorder %v607, %v328
        %vm621 = vcmp.eq.s32.totalorder %v607, %v329
        %vm622 = vcmp.eq.s32.totalorder %v607, %v330
        %vm623 = vcmp.eq.s32.totalorder %v607, %v331
        %v624 = vsel %vm608, 1, 0
        %v625 = vsel %vm609, 1, 0
        %v626 = vsel %vm610, 1, 0
        %v627 = vsel %vm611, 1, 0
        %v628 = vsel %vm612, 1, 0
        %v629 = vsel %vm613, 1, 0
        %v630 = vsel %vm614, 1, 0
        %v631 = vsel %vm615, 1, 0
        %v632 = vsel %vm616, 1, 0
        %v633 = vsel %vm617, 1, 0
        %v634 = vsel %vm618, 1, 0
        %v635 = vsel %vm619, 1, 0
        %v636 = vsel %vm620, 1, 0
        %v637 = vsel %vm621, 1, 0
        %v638 = vsel %vm622, 1, 0
        %v639 = vsel %vm623, 1, 0
        %v640 = vcvt.s32.f32 %v624
        %v641 = vcvt.s32.f32 %v625
        %v642 = vcvt.s32.f32 %v626
        %v643 = vcvt.s32.f32 %v627
        %v644 = vcvt.s32.f32 %v628
        %v645 = vcvt.s32.f32 %v629
        %v646 = vcvt.s32.f32 %v630
        %v647 = vcvt.s32.f32 %v631
        %v648 = vcvt.s32.f32 %v632
        %v649 = vcvt.s32.f32 %v633
        %v650 = vcvt.s32.f32 %v634
        %v651 = vcvt.s32.f32 %v635
        %v652 = vcvt.s32.f32 %v636
        %v653 = vcvt.s32.f32 %v637
        %v654 = vcvt.s32.f32 %v638
        %v655 = vcvt.s32.f32 %v639
        %v656 = vadd.f32 %v588, %v640
        %v657 = vadd.f32 %v589, %v641
        %v658 = vadd.f32 %v590, %v642
        %v659 = vadd.f32 %v591, %v643
        %v660 = vadd.f32 %v592, %v644
        %v661 = vadd.f32 %v593, %v645
        %v662 = vadd.f32 %v594, %v646
        %v663 = vadd.f32 %v595, %v647
        %v664 = vadd.f32 %v596, %v648
        %v665 = vadd.f32 %v597, %v649
        %v666 = vadd.f32 %v598, %v650
        %v667 = vadd.f32 %v599, %v651
        %v668 = vadd.f32 %v600, %v652
        %v669 = vadd.f32 %v601, %v653
        %v670 = vadd.f32 %v602, %v654
        %v671 = vadd.f32 %v603, %v655
        %v672 = vlaneseq
        %v673 = vshrl.u32 %v672, 7
        %v674 = vsub.s32 5, %v673
        %v675 = vrot.slane %v314, %v674
        %vm676 = vcmp.eq.s32.totalorder %v675, %v316
        %vm677 = vcmp.eq.s32.totalorder %v675, %v317
        %vm678 = vcmp.eq.s32.totalorder %v675, %v318
        %vm679 = vcmp.eq.s32.totalorder %v675, %v319
        %vm680 = vcmp.eq.s32.totalorder %v675, %v320
        %vm681 = vcmp.eq.s32.totalorder %v675, %v321
        %vm682 = vcmp.eq.s32.totalorder %v675, %v322
        %vm683 = vcmp.eq.s32.totalorder %v675, %v323
        %vm684 = vcmp.eq.s32.totalorder %v675, %v324
        %vm685 = vcmp.eq.s32.totalorder %v675, %v325
        %vm686 = vcmp.eq.s32.totalorder %v675, %v326
        %vm687 = vcmp.eq.s32.totalorder %v675, %v327
        %vm688 = vcmp.eq.s32.totalorder %v675, %v328
        %vm689 = vcmp.eq.s32.totalorder %v675, %v329
        %vm690 = vcmp.eq.s32.totalorder %v675, %v330
        %vm691 = vcmp.eq.s32.totalorder %v675, %v331
        %v692 = vsel %vm676, 1, 0
        %v693 = vsel %vm677, 1, 0
        %v694 = vsel %vm678, 1, 0
        %v695 = vsel %vm679, 1, 0
        %v696 = vsel %vm680, 1, 0
        %v697 = vsel %vm681, 1, 0
        %v698 = vsel %vm682, 1, 0
        %v699 = vsel %vm683, 1, 0
        %v700 = vsel %vm684, 1, 0
        %v701 = vsel %vm685, 1, 0
        %v702 = vsel %vm686, 1, 0
        %v703 = vsel %vm687, 1, 0
        %v704 = vsel %vm688, 1, 0
        %v705 = vsel %vm689, 1, 0
        %v706 = vsel %vm690, 1, 0
        %v707 = vsel %vm691, 1, 0
        %v708 = vcvt.s32.f32 %v692
        %v709 = vcvt.s32.f32 %v693
        %v710 = vcvt.s32.f32 %v694
        %v711 = vcvt.s32.f32 %v695
        %v712 = vcvt.s32.f32 %v696
        %v713 = vcvt.s32.f32 %v697
        %v714 = vcvt.s32.f32 %v698
        %v715 = vcvt.s32.f32 %v699
        %v716 = vcvt.s32.f32 %v700
        %v717 = vcvt.s32.f32 %v701
        %v718 = vcvt.s32.f32 %v702
        %v719 = vcvt.s32.f32 %v703
        %v720 = vcvt.s32.f32 %v704
        %v721 = vcvt.s32.f32 %v705
        %v722 = vcvt.s32.f32 %v706
        %v723 = vcvt.s32.f32 %v707
        %v724 = vadd.f32 %v656, %v708
        %v725 = vadd.f32 %v657, %v709
        %v726 = vadd.f32 %v658, %v710
        %v727 = vadd.f32 %v659, %v711
        %v728 = vadd.f32 %v660, %v712
        %v729 = vadd.f32 %v661, %v713
        %v730 = vadd.f32 %v662, %v714
        %v731 = vadd.f32 %v663, %v715
        %v732 = vadd.f32 %v664, %v716
        %v733 = vadd.f32 %v665, %v717
        %v734 = vadd.f32 %v666, %v718
        %v735 = vadd.f32 %v667, %v719
        %v736 = vadd.f32 %v668, %v720
        %v737 = vadd.f32 %v669, %v721
        %v738 = vadd.f32 %v670, %v722
        %v739 = vadd.f32 %v671, %v723
        %v740 = vlaneseq
        %v741 = vshrl.u32 %v740, 7
        %v742 = vsub.s32 6, %v741
        %v743 = vrot.slane %v314, %v742
        %vm744 = vcmp.eq.s32.totalorder %v743, %v316
        %vm745 = vcmp.eq.s32.totalorder %v743, %v317
        %vm746 = vcmp.eq.s32.totalorder %v743, %v318
        %vm747 = vcmp.eq.s32.totalorder %v743, %v319
        %vm748 = vcmp.eq.s32.totalorder %v743, %v320
        %vm749 = vcmp.eq.s32.totalorder %v743, %v321
        %vm750 = vcmp.eq.s32.totalorder %v743, %v322
        %vm751 = vcmp.eq.s32.totalorder %v743, %v323
        %vm752 = vcmp.eq.s32.totalorder %v743, %v324
        %vm753 = vcmp.eq.s32.totalorder %v743, %v325
        %vm754 = vcmp.eq.s32.totalorder %v743, %v326
        %vm755 = vcmp.eq.s32.totalorder %v743, %v327
        %vm756 = vcmp.eq.s32.totalorder %v743, %v328
        %vm757 = vcmp.eq.s32.totalorder %v743, %v329
        %vm758 = vcmp.eq.s32.totalorder %v743, %v330
        %vm759 = vcmp.eq.s32.totalorder %v743, %v331
        %v760 = vsel %vm744, 1, 0
        %v761 = vsel %vm745, 1, 0
        %v762 = vsel %vm746, 1, 0
        %v763 = vsel %vm747, 1, 0
        %v764 = vsel %vm748, 1, 0
        %v765 = vsel %vm749, 1, 0
        %v766 = vsel %vm750, 1, 0
        %v767 = vsel %vm751, 1, 0
        %v768 = vsel %vm752, 1, 0
        %v769 = vsel %vm753, 1, 0
        %v770 = vsel %vm754, 1, 0
        %v771 = vsel %vm755, 1, 0
        %v772 = vsel %vm756, 1, 0
        %v773 = vsel %vm757, 1, 0
        %v774 = vsel %vm758, 1, 0
        %v775 = vsel %vm759, 1, 0
        %v776 = vcvt.s32.f32 %v760
        %v777 = vcvt.s32.f32 %v761
        %v778 = vcvt.s32.f32 %v762
        %v779 = vcvt.s32.f32 %v763
        %v780 = vcvt.s32.f32 %v764
        %v781 = vcvt.s32.f32 %v765
        %v782 = vcvt.s32.f32 %v766
        %v783 = vcvt.s32.f32 %v767
        %v784 = vcvt.s32.f32 %v768
        %v785 = vcvt.s32.f32 %v769
        %v786 = vcvt.s32.f32 %v770
        %v787 = vcvt.s32.f32 %v771
        %v788 = vcvt.s32.f32 %v772
        %v789 = vcvt.s32.f32 %v773
        %v790 = vcvt.s32.f32 %v774
        %v791 = vcvt.s32.f32 %v775
        %v792 = vadd.f32 %v724, %v776
        %v793 = vadd.f32 %v725, %v777
        %v794 = vadd.f32 %v726, %v778
        %v795 = vadd.f32 %v727, %v779
        %v796 = vadd.f32 %v728, %v780
        %v797 = vadd.f32 %v729, %v781
        %v798 = vadd.f32 %v730, %v782
        %v799 = vadd.f32 %v731, %v783
        %v800 = vadd.f32 %v732, %v784
        %v801 = vadd.f32 %v733, %v785
        %v802 = vadd.f32 %v734, %v786
        %v803 = vadd.f32 %v735, %v787
        %v804 = vadd.f32 %v736, %v788
        %v805 = vadd.f32 %v737, %v789
        %v806 = vadd.f32 %v738, %v790
        %v807 = vadd.f32 %v739, %v791
        %v808 = vlaneseq
        %v809 = vshrl.u32 %v808, 7
        %v810 = vsub.s32 7, %v809
        %v811 = vrot.slane %v314, %v810
        %vm812 = vcmp.eq.s32.totalorder %v811, %v316
        %vm813 = vcmp.eq.s32.totalorder %v811, %v317
        %vm814 = vcmp.eq.s32.totalorder %v811, %v318
        %vm815 = vcmp.eq.s32.totalorder %v811, %v319
        %vm816 = vcmp.eq.s32.totalorder %v811, %v320
        %vm817 = vcmp.eq.s32.totalorder %v811, %v321
        %vm818 = vcmp.eq.s32.totalorder %v811, %v322
        %vm819 = vcmp.eq.s32.totalorder %v811, %v323
        %vm820 = vcmp.eq.s32.totalorder %v811, %v324
        %vm821 = vcmp.eq.s32.totalorder %v811, %v325
        %vm822 = vcmp.eq.s32.totalorder %v811, %v326
        %vm823 = vcmp.eq.s32.totalorder %v811, %v327
        %vm824 = vcmp.eq.s32.totalorder %v811, %v328
        %vm825 = vcmp.eq.s32.totalorder %v811, %v329
        %vm826 = vcmp.eq.s32.totalorder %v811, %v330
        %vm827 = vcmp.eq.s32.totalorder %v811, %v331
        %v828 = vsel %vm812, 1, 0
        %v829 = vsel %vm813, 1, 0
        %v830 = vsel %vm814, 1, 0
        %v831 = vsel %vm815, 1, 0
        %v832 = vsel %vm816, 1, 0
        %v833 = vsel %vm817, 1, 0
        %v834 = vsel %vm818, 1, 0
        %v835 = vsel %vm819, 1, 0
        %v836 = vsel %vm820, 1, 0
        %v837 = vsel %vm821, 1, 0
        %v838 = vsel %vm822, 1, 0
        %v839 = vsel %vm823, 1, 0
        %v840 = vsel %vm824, 1, 0
        %v841 = vsel %vm825, 1, 0
        %v842 = vsel %vm826, 1, 0
        %v843 = vsel %vm827, 1, 0
        %v844 = vcvt.s32.f32 %v828
        %v845 = vcvt.s32.f32 %v829
        %v846 = vcvt.s32.f32 %v830
        %v847 = vcvt.s32.f32 %v831
        %v848 = vcvt.s32.f32 %v832
        %v849 = vcvt.s32.f32 %v833
        %v850 = vcvt.s32.f32 %v834
        %v851 = vcvt.s32.f32 %v835
        %v852 = vcvt.s32.f32 %v836
        %v853 = vcvt.s32.f32 %v837
        %v854 = vcvt.s32.f32 %v838
        %v855 = vcvt.s32.f32 %v839
        %v856 = vcvt.s32.f32 %v840
        %v857 = vcvt.s32.f32 %v841
        %v858 = vcvt.s32.f32 %v842
        %v859 = vcvt.s32.f32 %v843
        %v860 = vadd.f32 %v792, %v844
        %v861 = vadd.f32 %v793, %v845
        %v862 = vadd.f32 %v794, %v846
        %v863 = vadd.f32 %v795, %v847
        %v864 = vadd.f32 %v796, %v848
        %v865 = vadd.f32 %v797, %v849
        %v866 = vadd.f32 %v798, %v850
        %v867 = vadd.f32 %v799, %v851
        %v868 = vadd.f32 %v800, %v852
        %v869 = vadd.f32 %v801, %v853
        %v870 = vadd.f32 %v802, %v854
        %v871 = vadd.f32 %v803, %v855
        %v872 = vadd.f32 %v804, %v856
        %v873 = vadd.f32 %v805, %v857
        %v874 = vadd.f32 %v806, %v858
        %v875 = vadd.f32 %v807, %v859
        %v876 = vld [vmem:[#allocation8] sm:$0xff]
        %877 = vmatprep.subr.mxu0 0.0
        %878 = vmatpush1.msra.mxu0 %v875
        %879 = vmatprep.subr.mxu0 0.0
        %880 = vmatpush1.msra.mxu0 %v874
        %881 = vmatprep.subr.mxu0 0.0
        %882 = vmatpush1.msra.mxu0 %v873
        %883 = vmatprep.subr.mxu0 0.0
        %884 = vmatpush1.msra.mxu0 %v872
        %885 = vmatprep.subr.mxu0 0.0
        %886 = vmatpush1.msra.mxu0 %v871
        %887 = vmatprep.subr.mxu0 0.0
        %888 = vmatpush1.msra.mxu0 %v870
        %889 = vmatprep.subr.mxu0 0.0
        %890 = vmatpush1.msra.mxu0 %v869
        %891 = vmatprep.subr.mxu0 0.0
        %892 = vmatpush1.msra.mxu0 %v868
        %893 = vmatprep.subr.mxu0 0.0
        %894 = vmatpush1.msra.mxu0 %v867
        %895 = vmatprep.subr.mxu0 0.0
        %896 = vmatpush1.msra.mxu0 %v866
        %897 = vmatprep.subr.mxu0 0.0
        %898 = vmatpush1.msra.mxu0 %v865
        %899 = vmatprep.subr.mxu0 0.0
        %900 = vmatpush1.msra.mxu0 %v864
        %901 = vmatprep.subr.mxu0 0.0
        %902 = vmatpush1.msra.mxu0 %v863
        %903 = vmatprep.subr.mxu0 0.0
        %904 = vmatpush1.msra.mxu0 %v862
        %905 = vmatprep.subr.mxu0 0.0
        %906 = vmatpush1.msra.mxu0 %v861
        %907 = vmatprep.subr.mxu0 0.0
        %908 = vmatpush1.msra.mxu0 %v860
        %909 = vmatprep.subr.mxu0 0.0
        %910 = vmatpush2.msra.mxu0 0.0
        %911 = vmatprep.subr.mxu0 0.0
        %912 = vmatpush2.msra.mxu0 0.0
        %913 = vmatprep.subr.mxu0 0.0
        %914 = vmatpush2.msra.mxu0 0.0
        %915 = vmatprep.subr.mxu0 0.0
        %916 = vmatpush2.msra.mxu0 0.0
        %917 = vmatprep.subr.mxu0 0.0
        %918 = vmatpush2.msra.mxu0 0.0
        %919 = vmatprep.subr.mxu0 0.0
        %920 = vmatpush2.msra.mxu0 0.0
        %921 = vmatprep.subr.mxu0 0.0
        %922 = vmatpush2.msra.mxu0 0.0
        %923 = vmatprep.subr.mxu0 0.0
        %924 = vmatpush2.msra.mxu0 0.0
        %925 = vmatprep.subr.mxu0 0.0
        %926 = vmatpush2.msra.mxu0 0.0
        %927 = vmatprep.subr.mxu0 0.0
        %928 = vmatpush2.msra.mxu0 0.0
        %929 = vmatprep.subr.mxu0 0.0
        %930 = vmatpush2.msra.mxu0 0.0
        %931 = vmatprep.subr.mxu0 0.0
        %932 = vmatpush2.msra.mxu0 0.0
        %933 = vmatprep.subr.mxu0 0.0
        %934 = vmatpush2.msra.mxu0 0.0
        %935 = vmatprep.subr.mxu0 0.0
        %936 = vmatpush2.msra.mxu0 0.0
        %937 = vmatprep.subr.mxu0 0.0
        %938 = vmatpush2.msra.mxu0 0.0
        %939 = vmatprep.subr.mxu0 0.0
        %940 = vmatpush2.msra.mxu0 0.0
        %941 = vmatprep.mubr.f32.mxu0 0.0
        %942 = vmatmul.mubr.f32.gmra.mxu0 %v876
        %v943 = vpop.f32.mrf.mxu0
        %v944 = vadd.f32 0.0, %v943
        %v945 = vpop.f32.mrf.mxu0
        %946 = vdwg.mxu0
        %v947 = vld [vmem:[%s268] sm:$0x1]
        %vm948 = vcmp.eq.s32.totalorder %v947, 0
        %v949 = vsel %vm948, 1, %v947
        %vm950 = vcmp.gt.s32.totalorder %v949, 1
        %v951 = vsub.s32 %v949, 1
        %v952 = vsel %vm950, %v951, %v949
        %vm953 = vcmp.gt.s32.totalorder %v952, 0
        %v954 = vsel %vm953, %v952, 0
        %vm955 = vcmp.lt.s32.totalorder %v954, 4
        %v956 = vsel %vm955, %v954, 4
        %v957 = vcvt.s32.f32 %v956
        %v958 = vrcp.pop %v957
        %v960 = vlaneseq
        %v961 = vshrl.u32 %v960, 7
        %v962 = vsub.s32 0, %v961
        %v963 = vrot.slane %v958, %v962
        %v965 = vmul.f32 %v944, %v963
        %v966 = vld [vmem:[%s260] sm:$0x1]
        %v968 = vlaneseq
        %v969 = vshrl.u32 %v968, 7
        %v970 = vsub.s32 0, %v969
        %v971 = vrot.slane %v966, %v970
        %v973 = vadd.f32 %v965, %v971
        %vm974 = vcmask 523264
        %975 = vst.msk [vmem:[%s313] sm:$0xff] %vm974, %v973
        %s976 = sand.u32 %s152, 1
        %s977 = scalar_lea.sflag [#allocation4], %s976
        %s978 = sand.u32 %s152, 1
        %s979 = smul.addr %s978, 8
        %s980 = scalar_lea.vmem [#allocation10], %s979
        // Predicated region
        $region53: #{tpu_custom_call.1} parent=35 // pred_check
          %p981 = pneg %p162
        $region54: #{tpu_custom_call.1} parent=35 // pred_check_branch
          %983 = sbr.rel (%p981) target = $region56
        $region55: #{tpu_custom_call.1} parent=35 // pred_region
          %s985 = ssub.s32 128, 128
          %986 = vsyncadd %s977, %s985
          %s987 = sadd.s32 %s30, %s29
          %s988 = smul.addr %s987, 128
          %s989 = scalar_lea.hbm %s4, %s988
          %s991 = sshll.u32 %s980, 4
          %s992 = int_to_ptr.vmem [resolvable:$true] %s991
          %994 = dma.vmem_to_hbm [thread:$0]  %s992, 128, %s989, %s977
        $region56: #{tpu_custom_call.1} parent=35 // pred_fallthru
          _
      $region36: #{tpu_custom_call.1} parent=5 // pred_fallthru
        _
      %p995 = scmp.le.s32.totalorder 2, %s20
      // Predicated region
      $region57: #{tpu_custom_call.1} parent=5 // pred_check
        %p996 = pneg %p995
      $region58: #{tpu_custom_call.1} parent=5 // pred_check_branch
        %998 = sbr.rel (%p996) target = $region60
      $region59: #{tpu_custom_call.1} parent=5 // pred_region
        %s999 = ssub.s32 %s20, 2
        // Predicated region
        $region61: #{tpu_custom_call.1} parent=59 // pred_check
          %p1000 = pneg %p168
        $region62: #{tpu_custom_call.1} parent=59 // pred_check_branch
          %1002 = sbr.rel (%p1000) target = $region64
        $region63: #{tpu_custom_call.1} parent=59 // pred_region
          %s1003 = sand.u32 %s153, 1
          %s1004 = scalar_lea.sflag [#allocation4], %s1003
          %s1005 = sand.u32 %s153, 1
          %s1006 = smul.addr %s1005, 8
          %s1007 = scalar_lea.vmem [#allocation10], %s1006
          %1008 = dma.done %s1004, 128
        $region64: #{tpu_custom_call.1} parent=59 // pred_fallthru
          _
      $region60: #{tpu_custom_call.1} parent=5 // pred_fallthru
        _
    $region6: #{tpu_custom_call.1} parent=1 // loop_footer
      %s24 = sadd.s32 1, %s20
    $region7: #{tpu_custom_call.1} parent=1 // loop_footer_branch
      %19 = sbr.rel target = $region3
    $region8: #{tpu_custom_call.1} parent=1 // loop_exit
      _
    %1009 = vsyncpa [#allocation3], 1
    %s1010 = scalar_lea.sflag [#allocation3], 1
    %1011 = vsyncpa %s1010, 1
    %1012 = vsyncpa [#allocation6], 1
    %s1013 = scalar_lea.sflag [#allocation6], 1
    %1014 = vsyncpa %s1013, 1
    %1015 = vsyncpa [#allocation9], 1
    %1016 = vsyncpa [#allocation4], 1
    %s1017 = scalar_lea.sflag [#allocation4], 1
    %1018 = vsyncpa %s1017, 1

</llo_original>
